<compile_context>
chip_gen: v5e
topology: v5e:2x2
jax: 0.10.0
libtpu: 0.0.40
codegen_flags: <defaults>
</compile_context>

<pallas_src>
import functools

import jax
import jax.numpy as jnp
from jax.experimental import pallas as pl
from jax.experimental.pallas import tpu as pltpu

HIDDEN = 128          # hidden width of the MLP (fixed by the module)
LANE = 128            # TPU lane width
SUBLANE_F32 = 8       # f32 sublane count


def _round_up(x, m):
    return ((x + m - 1) // m) * m


def _mlp_kernel(x_ref, w1_ref, b1_ref, w2_ref, b2_ref, o_ref):
    # Both matmuls (MXU) + bias adds + ReLU (VPU), fully VMEM-resident.
    x = x_ref[...]
    h = jnp.dot(x, w1_ref[...], preferred_element_type=jnp.float32)
    h = h + b1_ref[...]                      # (1, 128) broadcasts over rows
    h = jnp.maximum(h, 0.0)                  # ReLU
    y = jnp.dot(h.astype(w2_ref.dtype), w2_ref[...],
                preferred_element_type=jnp.float32)
    y = y + b2_ref[...]                      # (1, C_pad) broadcasts over rows
    o_ref[...] = y.astype(o_ref.dtype)


def _vmem_capacity_bytes():
    # Per-generation VMEM (128 MiB on v5e/v6e, 64 MiB on v7x).
    try:
        return int(pltpu.get_tpu_info().vmem_capacity_bytes)
    except Exception:
        return 64 * 1024 * 1024  # conservative fallback (v7x-sized)


def _pick_tile(batch, in_dim, c_pad, x_bytes, out_bytes):
    """Pick the batch tile size from the VMEM budget (all inputs are Python ints)."""
    vmem = _vmem_capacity_bytes()
    budget = vmem // 2  # leave headroom for the compiler / pipeline internals

    # Weights + biases resident in VMEM (constant index_map -> effectively resident).
    weights_bytes = (in_dim * HIDDEN + HIDDEN * c_pad) * x_bytes + (HIDDEN + c_pad) * 4
    # Per-row cost: double-buffered x tile, double-buffered output tile, f32 hidden.
    per_row = 2 * in_dim * x_bytes + 2 * c_pad * out_bytes + HIDDEN * 4

    tm = max(SUBLANE_F32, (budget - weights_bytes) // max(per_row, 1))
    tm = min(tm, 2048, batch)

    sub = SUBLANE_F32 if x_bytes >= 4 else 16  # bf16 packs 16 rows per vreg
    if batch > sub:
        tm = max(sub, (tm // sub) * sub)       # sublane-aligned tiles
        if batch >= 2 * sub:
            # Ensure >=2 grid steps so both v7x TensorCores get work.
            tm = min(tm, _round_up(pl.cdiv(batch, 2), sub))
    else:
        tm = batch                             # tiny batch: full-extent block is legal

    return int(tm), vmem, weights_bytes, per_row


@functools.partial(jax.jit, static_argnames=("compute_dtype",))
def mlp_forward(x, w1, b1, w2, b2, compute_dtype=None):
    """2-layer MLP forward with a fused Pallas kernel, tiled over the batch axis."""
    batch, in_dim = x.shape
    num_classes = w2.shape[1]
    c_pad = max(LANE, _round_up(num_classes, LANE))   # lane-dense output width

    cdt = jnp.dtype(compute_dtype) if compute_dtype is not None else x.dtype
    x_bytes = jnp.dtype(cdt).itemsize
    out_bytes = jnp.dtype(x.dtype).itemsize

    # Prepare operands: optional compute-dtype cast + lane-dense padding of w2/b2.
    x_c = x.astype(cdt)
    w1_c = w1.astype(cdt)
    w2_p = jnp.zeros((HIDDEN, c_pad), cdt).at[:, :num_classes].set(w2.astype(cdt))
    b1_2d = b1.reshape(1, HIDDEN).astype(jnp.float32)
    b2_p = jnp.zeros((1, c_pad), jnp.float32).at[:, :num_classes].set(
        b2.astype(jnp.float32))

    # TODO(synk): for very large in_dim (>~8K) add a K reduction grid axis with an
    # f32 VMEM accumulator instead of loading the full (tm, in_dim) x tile per step.
    tm, vmem, weights_bytes, per_row = _pick_tile(
        batch, in_dim, c_pad, x_bytes, out_bytes)
    grid = (pl.cdiv(batch, tm),)

    # Raise the scoped-VMEM limit so the chosen tile is not rejected/shrunk.
    needed = 2 * weights_bytes + tm * per_row + (4 << 20)
    vmem_limit = int(min(max(needed, 32 << 20), vmem * 9 // 10))

    flops = 2.0 * batch * (in_dim * HIDDEN + HIDDEN * c_pad)
    bytes_accessed = (batch * in_dim * x_bytes + batch * c_pad * out_bytes
                      + (in_dim * HIDDEN + HIDDEN * c_pad) * x_bytes
                      + (HIDDEN + c_pad) * 4)

    out = pl.pallas_call(
        _mlp_kernel,
        out_shape=jax.ShapeDtypeStruct((batch, c_pad), x.dtype),
        grid_spec=pltpu.PrefetchScalarGridSpec(
            num_scalar_prefetch=0,
            grid=grid,
            in_specs=[
                pl.BlockSpec((tm, in_dim), lambda i: (i, 0)),          # x tile
                pl.BlockSpec((in_dim, HIDDEN), lambda i: (0, 0)),      # w1 (full)
                pl.BlockSpec((1, HIDDEN), lambda i: (0, 0)),           # b1 (full)
                pl.BlockSpec((HIDDEN, c_pad), lambda i: (0, 0)),       # w2 (padded)
                pl.BlockSpec((1, c_pad), lambda i: (0, 0)),            # b2 (padded)
            ],
            out_specs=pl.BlockSpec((tm, c_pad), lambda i: (i, 0)),     # lane-dense
        ),
        compiler_params=pltpu.CompilerParams(
            dimension_semantics=("parallel",),
            vmem_limit_bytes=vmem_limit,
        ),
        cost_estimate=pl.CostEstimate(
            flops=int(flops), transcendentals=0, bytes_accessed=int(bytes_accessed)),
    )(x_c, w1_c, b1_2d, w2_p, b2_p)

    return out[:, :num_classes]


def init_mlp_params(key, input_dim, num_classes, dtype=jnp.float32):
    """Deterministic init mirroring nn.Linear's default U(-1/sqrt(fan_in), 1/sqrt(fan_in))."""
    k1, k2, k3, k4 = jax.random.split(key, 4)
    bound1 = 1.0 / jnp.sqrt(jnp.float32(input_dim))
    bound2 = 1.0 / jnp.sqrt(jnp.float32(HIDDEN))
    w1 = jax.random.uniform(k1, (input_dim, HIDDEN), dtype, -bound1, bound1)
    b1 = jax.random.uniform(k2, (HIDDEN,), dtype, -bound1, bound1)
    w2 = jax.random.uniform(k3, (HIDDEN, num_classes), dtype, -bound2, bound2)
    b2 = jax.random.uniform(k4, (num_classes,), dtype, -bound2, bound2)
    return w1, b1, w2, b2


if __name__ == "__main__":
    key = jax.random.PRNGKey(0)
    batch, input_dim, num_classes = 8, 32, 10

    kx, kp = jax.random.split(key)
    x = jax.random.normal(kx, (batch, input_dim), jnp.float32)
    w1, b1, w2, b2 = init_mlp_params(kp, input_dim, num_classes)

    out = mlp_forward(x, w1, b1, w2, b2)
    out = jax.block_until_ready(out)

    # Reference check in plain JAX (same math as the torch module).
    ref = jnp.maximum(x @ w1 + b1, 0.0) @ w2 + b2
    assert out.shape == (batch, num_classes)
    assert jnp.allclose(out, ref, atol=1e-5, rtol=1e-5), "mismatch vs reference"

    print("KERNEL_OK")
</pallas_src>

<mosaic_0001>
module attributes {stable_mosaic.version = 11 : i64} {
  func.func @_mlp_kernel(%arg0: i32, %arg1: memref<8x32xf32, #tpu.memory_space<vmem>>, %arg2: memref<32x128xf32, #tpu.memory_space<vmem>>, %arg3: memref<1x128xf32, #tpu.memory_space<vmem>>, %arg4: memref<128x128xf32, #tpu.memory_space<vmem>>, %arg5: memref<1x128xf32, #tpu.memory_space<vmem>>, %arg6: memref<8x128xf32, #tpu.memory_space<vmem>>) attributes {dimension_semantics = [#tpu.dimension_semantics<parallel>], iteration_bounds = array<i64: 1>, scalar_prefetch = 0 : i64, scratch_operands = 0 : i64, tpu.core_type = #tpu.core_type<tc>, window_params = [{transform_indices = @transform_0, window_bounds = array<i64: 8, 32>}, {pipeline_mode = #tpu.pipeline_mode<synchronous>, transform_indices = @transform_1, window_bounds = array<i64: 32, 128>}, {pipeline_mode = #tpu.pipeline_mode<synchronous>, transform_indices = @transform_2, window_bounds = array<i64: 1, 128>}, {pipeline_mode = #tpu.pipeline_mode<synchronous>, transform_indices = @transform_3, window_bounds = array<i64: 128, 128>}, {pipeline_mode = #tpu.pipeline_mode<synchronous>, transform_indices = @transform_4, window_bounds = array<i64: 1, 128>}, {transform_indices = @transform_5, window_bounds = array<i64: 8, 128>}]} {
    %c0 = arith.constant 0 : index
    %c0_0 = arith.constant 0 : index
    %0 = vector.load %arg1[%c0, %c0_0] : memref<8x32xf32, #tpu.memory_space<vmem>>, vector<8x32xf32>
    %c0_1 = arith.constant 0 : index
    %c0_2 = arith.constant 0 : index
    %1 = vector.load %arg2[%c0_1, %c0_2] : memref<32x128xf32, #tpu.memory_space<vmem>>, vector<32x128xf32>
    %cst = arith.constant dense<0.000000e+00> : vector<8x128xf32>
    %2 = tpu.matmul %0, %1, %cst {dimension_numbers = #tpu.dot_dimension_numbers<[1], [0], [0], [1], [0, 0, 1, 1], [], []>} : vector<8x32xf32>, vector<32x128xf32>, vector<8x128xf32> -> vector<8x128xf32>
    %c0_3 = arith.constant 0 : index
    %c0_4 = arith.constant 0 : index
    %3 = vector.load %arg3[%c0_3, %c0_4] : memref<1x128xf32, #tpu.memory_space<vmem>>, vector<1x128xf32>
    %4 = vector.broadcast %3 : vector<1x128xf32> to vector<8x128xf32>
    %5 = arith.addf %2, %4 : vector<8x128xf32>
    %cst_5 = arith.constant 0.000000e+00 : f32
    %6 = vector.broadcast %cst_5 : f32 to vector<8x128xf32>
    %7 = arith.maximumf %5, %6 : vector<8x128xf32>
    %c0_6 = arith.constant 0 : index
    %c0_7 = arith.constant 0 : index
    %8 = vector.load %arg4[%c0_6, %c0_7] : memref<128x128xf32, #tpu.memory_space<vmem>>, vector<128x128xf32>
    %cst_8 = arith.constant dense<0.000000e+00> : vector<8x128xf32>
    %9 = tpu.matmul %7, %8, %cst_8 {dimension_numbers = #tpu.dot_dimension_numbers<[1], [0], [0], [1], [0, 0, 1, 1], [], []>} : vector<8x128xf32>, vector<128x128xf32>, vector<8x128xf32> -> vector<8x128xf32>
    %c0_9 = arith.constant 0 : index
    %c0_10 = arith.constant 0 : index
    %10 = vector.load %arg5[%c0_9, %c0_10] : memref<1x128xf32, #tpu.memory_space<vmem>>, vector<1x128xf32>
    %11 = vector.broadcast %10 : vector<1x128xf32> to vector<8x128xf32>
    %12 = arith.addf %9, %11 : vector<8x128xf32>
    %c0_11 = arith.constant 0 : index
    %c0_12 = arith.constant 0 : index
    %13 = vector.load %arg6[%c0_11, %c0_12] : memref<8x128xf32, #tpu.memory_space<vmem>>, vector<8x128xf32>
    tpu.vector_store %arg6[%c0_11, %c0_12], %12 {strides = array<i32>} : memref<8x128xf32, #tpu.memory_space<vmem>>, vector<8x128xf32>,
    return
  }
  func.func @transform_0(%arg0: i32) -> (i32, i32) {
    %c0_i32 = arith.constant 0 : i32
    %c0_i32_0 = arith.constant 0 : i32
    return %arg0, %c0_i32 : i32, i32
  }
  func.func @transform_1(%arg0: i32) -> (i32, i32) {
    %c0_i32 = arith.constant 0 : i32
    %c0_i32_0 = arith.constant 0 : i32
    %c0_i32_1 = arith.constant 0 : i32
    return %c0_i32, %c0_i32_0 : i32, i32
  }
  func.func @transform_2(%arg0: i32) -> (i32, i32) {
    %c0_i32 = arith.constant 0 : i32
    %c0_i32_0 = arith.constant 0 : i32
    %c0_i32_1 = arith.constant 0 : i32
    return %c0_i32, %c0_i32_0 : i32, i32
  }
  func.func @transform_3(%arg0: i32) -> (i32, i32) {
    %c0_i32 = arith.constant 0 : i32
    %c0_i32_0 = arith.constant 0 : i32
    %c0_i32_1 = arith.constant 0 : i32
    return %c0_i32, %c0_i32_0 : i32, i32
  }
  func.func @transform_4(%arg0: i32) -> (i32, i32) {
    %c0_i32 = arith.constant 0 : i32
    %c0_i32_0 = arith.constant 0 : i32
    %c0_i32_1 = arith.constant 0 : i32
    return %c0_i32, %c0_i32_0 : i32, i32
  }
  func.func @transform_5(%arg0: i32) -> (i32, i32) {
    %c0_i32 = arith.constant 0 : i32
    %c0_i32_0 = arith.constant 0 : i32
    return %arg0, %c0_i32 : i32, i32
  }
}

</mosaic_0001>

<llo_original>
// kernel: mlp_forward.1
$region0: #{mlp_forward.1}
  #allocation0 [shape = 'u32[]', space=smem, size = 0x4, offset = 0x4, fixed_abs, tag = 'smem constant byte address 0x4 - core index']
  #allocation1 [shape = 'u32[72,128]{1,0:T(1,128)}', space=vmem, size = 0x9000, scoped, tag = 'internal scratch']
  %s0 = inlined_call_operand.vmem [shape: f32[8,32], index: 0, kind: input, shape index: {}]
  %s1 = inlined_call_operand.vmem [shape: f32[32,128], index: 1, kind: input, shape index: {}]
  %s2 = inlined_call_operand.vmem [shape: f32[1,128], index: 2, kind: input, shape index: {}]
  %s3 = inlined_call_operand.vmem [shape: f32[128,128], index: 3, kind: input, shape index: {}]
  %s4 = inlined_call_operand.vmem [shape: f32[1,128], index: 4, kind: input, shape index: {}]
  %s5 = inlined_call_operand.hbm [shape: f32[8,128], index: 5, kind: output, shape index: {}]
  %s6 = sld [smem:[#allocation0]]
  $region30: #{mlp_forward.1} parent=0
    _
  %s8 = ssub.s32 1, %s6
  %s9 = scalar_select 0, %s8, %s6
  $region1: #{mlp_forward.1} parent=0
    #allocation2 [shape = 'u8[4096]{0}', space=vmem, size = 0x1000, scoped, tag = 'output window, operand 0, single buffered']
    #allocation3 [shape = 's32[1]{0}', space=sflag, size = 0x4, scoped, tag = 'scoped memory for mlp_forward.1']
    %10 = vsyncpa [#allocation3], 0
    // Predicated region
    $region2: #{mlp_forward.1} parent=1 // pred_check
      _
    $region3: #{mlp_forward.1} parent=1 // pred_check_branch
      %12 = sbr.rel (0) target = $region5
    $region4: #{mlp_forward.1} parent=1 // pred_region
      _
    $region5: #{mlp_forward.1} parent=1 // pred_fallthru
      _
    // Predicated region
    $region6: #{mlp_forward.1} parent=1 // pred_check
      _
    $region7: #{mlp_forward.1} parent=1 // pred_check_branch
      %14 = sbr.rel (0) target = $region9
    $region8: #{mlp_forward.1} parent=1 // pred_region
      _
    $region9: #{mlp_forward.1} parent=1 // pred_fallthru
      _
    // Predicated region
    $region10: #{mlp_forward.1} parent=1 // pred_check
      _
    $region11: #{mlp_forward.1} parent=1 // pred_check_branch
      %16 = sbr.rel (0) target = $region13
    $region12: #{mlp_forward.1} parent=1 // pred_region
      _
    $region13: #{mlp_forward.1} parent=1 // pred_fallthru
      _
    // Predicated region
    $region14: #{mlp_forward.1} parent=1 // pred_check
      _
    $region15: #{mlp_forward.1} parent=1 // pred_check_branch
      %18 = sbr.rel (0) target = $region17
    $region16: #{mlp_forward.1} parent=1 // pred_region
      _
    $region17: #{mlp_forward.1} parent=1 // pred_fallthru
      _
    // Predicated region
    $region18: #{mlp_forward.1} parent=1 // pred_check
      _
    $region19: #{mlp_forward.1} parent=1 // pred_check_branch
      %20 = sbr.rel (0) target = $region21
    $region20: #{mlp_forward.1} parent=1 // pred_region
      _
    $region21: #{mlp_forward.1} parent=1 // pred_fallthru
      _
    %v21 = vld [vmem:[%s0] sm:$0xff]
    %v22 = vld [vmem:[%s1] sm:$0xff]
    %v23 = vld [vmem:[%s1 + $0x8] sm:$0xff]
    %v24 = vld [vmem:[%s1 + $0x10] sm:$0xff]
    %v25 = vld [vmem:[%s1 + $0x18] sm:$0xff]
    %v26 = vld [vmem:[%s2] sm:$0x1]
    %v28 = vperm.slane %v26, 0
    %vm30 = vcmask 261120
    %v32 = vsel %vm30, %v21, 0
    %34 = vmatpush.msra.mxu0 0.0
    %35 = vmatpush.msra.mxu0 0.0
    %36 = vmatpush.msra.mxu0 0.0
    %37 = vmatpush.msra.mxu0 0.0
    %38 = vmatpush.msra.mxu0 0.0
    %39 = vmatpush.msra.mxu0 0.0
    %40 = vmatpush.msra.mxu0 0.0
    %41 = vmatpush.msra.mxu0 0.0
    %42 = vmatpush.msra.mxu0 0.0
    %43 = vmatpush.msra.mxu0 0.0
    %44 = vmatpush.msra.mxu0 0.0
    %45 = vmatpush.msra.mxu0 0.0
    %46 = vmatpush.msra.mxu0 %v25
    %47 = vmatpush.msra.mxu0 %v24
    %48 = vmatpush.msra.mxu0 %v23
    %49 = vmatpush.msra.mxu0 %v22
    %50 = vmatmul.f32.gmra.mxu0 %v32
    %v51 = vpop.f32.mrf.mxu0
    %v52 = vadd.f32 %v28, %v51
    %53 = vdwg.mxu0
    %v54 = vmax.f32 %v52, 0.0
    %v55 = vld [vmem:[%s3] sm:$0xff]
    %v56 = vld [vmem:[%s3 + $0x8] sm:$0xff]
    %v57 = vld [vmem:[%s3 + $0x10] sm:$0xff]
    %v58 = vld [vmem:[%s3 + $0x18] sm:$0xff]
    %v59 = vld [vmem:[%s3 + $0x20] sm:$0xff]
    %v60 = vld [vmem:[%s3 + $0x28] sm:$0xff]
    %v61 = vld [vmem:[%s3 + $0x30] sm:$0xff]
    %v62 = vld [vmem:[%s3 + $0x38] sm:$0xff]
    %v63 = vld [vmem:[%s3 + $0x40] sm:$0xff]
    %v64 = vld [vmem:[%s3 + $0x48] sm:$0xff]
    %v65 = vld [vmem:[%s3 + $0x50] sm:$0xff]
    %v66 = vld [vmem:[%s3 + $0x58] sm:$0xff]
    %v67 = vld [vmem:[%s3 + $0x60] sm:$0xff]
    %v68 = vld [vmem:[%s3 + $0x68] sm:$0xff]
    %v69 = vld [vmem:[%s3 + $0x70] sm:$0xff]
    %v70 = vld [vmem:[%s3 + $0x78] sm:$0xff]
    %v71 = vld [vmem:[%s4] sm:$0x1]
    %v73 = vperm.slane %v71, 0
    %75 = vmatpush.msra.mxu0 %v70
    %76 = vmatpush.msra.mxu0 %v69
    %77 = vmatpush.msra.mxu0 %v68
    %78 = vmatpush.msra.mxu0 %v67
    %79 = vmatpush.msra.mxu0 %v66
    %80 = vmatpush.msra.mxu0 %v65
    %81 = vmatpush.msra.mxu0 %v64
    %82 = vmatpush.msra.mxu0 %v63
    %83 = vmatpush.msra.mxu0 %v62
    %84 = vmatpush.msra.mxu0 %v61
    %85 = vmatpush.msra.mxu0 %v60
    %86 = vmatpush.msra.mxu0 %v59
    %87 = vmatpush.msra.mxu0 %v58
    %88 = vmatpush.msra.mxu0 %v57
    %89 = vmatpush.msra.mxu0 %v56
    %90 = vmatpush.msra.mxu0 %v55
    %91 = vmatmul.f32.gmra.mxu0 %v54
    %v92 = vpop.f32.mrf.mxu0
    %v93 = vadd.f32 %v73, %v92
    %94 = vdwg.mxu0
    %95 = vst [vmem:[#allocation2] sm:$0xff] %v93
    // Predicated region
    $region22: #{mlp_forward.1} parent=1 // pred_check
      _
    $region23: #{mlp_forward.1} parent=1 // pred_check_branch
      %97 = sbr.rel (0) target = $region25
    $region24: #{mlp_forward.1} parent=1 // pred_region
      %99 = vsyncadd [#allocation3], 0
      %s101 = sshll.u32 [#allocation2], 4
      %s102 = int_to_ptr.vmem [resolvable:$true] %s101
      %s103 = sshll.u32 %s5, 4
      %s104 = int_to_ptr.hbm [resolvable:$true] %s103
      %106 = dma.vmem_to_hbm [thread:$0]  %s102, 128, %s104, [#allocation3]
    $region25: #{mlp_forward.1} parent=1 // pred_fallthru
      _
    // Predicated region
    $region26: #{mlp_forward.1} parent=1 // pred_check
      _
    $region27: #{mlp_forward.1} parent=1 // pred_check_branch
      %108 = sbr.rel (0) target = $region29
    $region28: #{mlp_forward.1} parent=1 // pred_region
      %110 = dma.done [#allocation3], 128
    $region29: #{mlp_forward.1} parent=1 // pred_fallthru
      _
    %111 = vsyncpa [#allocation3], 1

</llo_original>
